<compile_context>
chip_gen: v7x
topology: tpu7x:2x2x1
jax: 0.10.0
libtpu: 0.0.40
codegen_flags: <defaults>
</compile_context>

<pallas_src>
import functools

import jax
import jax.numpy as jnp
from jax.experimental import pallas as pl
from jax.experimental.pallas import tpu as pltpu


# ----------------------------- Pallas kernels ------------------------------ #

def _stats_kernel(x_ref, acc_ref, *, lane, flush_every):
    """Partial per-channel sum / sum-of-squares for one (C, T1) tile.

    Grid = (n_t1 ["parallel"], B ["arbitrary" reduction, innermost]).  The
    output block stays resident across the batch axis.  Per-chunk sums go into
    local f32 (C, lane) values; acc_ref is read-modified-written only at flush
    points (once per grid step for C <= 64) so the vst slot is not saturated.
    """
    @pl.when(pl.program_id(1) == 0)
    def _():
        acc_ref[...] = jnp.zeros_like(acc_ref)

    c = x_ref.shape[1]
    n_chunks = x_ref.shape[2] // lane
    s = jnp.zeros((c, lane), jnp.float32)
    q = jnp.zeros((c, lane), jnp.float32)
    for k in range(n_chunks):                         # static unroll, 128-aligned
        chunk = x_ref[0, :, pl.ds(k * lane, lane)].astype(jnp.float32)
        s = s + chunk
        q = q + chunk * chunk
        last = k == n_chunks - 1
        if last or ((k + 1) % flush_every == 0):      # flush: single RMW of acc
            acc_ref[0, 0] += s
            acc_ref[0, 1] += q
            if not last:
                s = jnp.zeros((c, lane), jnp.float32)
                q = jnp.zeros((c, lane), jnp.float32)


def _apply_kernel(mean_ref, wcat_ref, bcat_ref, x_ref, g_ref, o_ref, *, c, cp):
    """Fused (2*Cp, num_w) 1x1-conv matmul + modulation.

    The BN 1/std and the "+1" are pre-folded into wcat/bcat (rows [0:c]), so
    the elementwise tail is just  maps[:c] * (x - mean) + maps[cp:cp+c].
    Each projection half is padded to cp = round_up(c, 8) rows so the split of
    the matmul result is sublane-aligned (free view, no XLU copies).
    """
    x = x_ref[0]                                       # (C, T)
    g = g_ref[0]                                       # (num_w, T), bf16 or f32
    maps = jnp.dot(wcat_ref[...], g,
                   preferred_element_type=jnp.float32) + bcat_ref[...]
    o_ref[0] = (maps[:c] * (x - mean_ref[...]) + maps[cp:cp + c]).astype(o_ref.dtype)


def _proj_kernel(wcat_ref, bcat_ref, g_ref, m_ref):
    """Fused 1x1-conv projections evaluated at bbox's native resolution."""
    maps = jnp.dot(wcat_ref[...], g_ref[0],
                   preferred_element_type=jnp.float32) + bcat_ref[...]
    m_ref[0] = maps.astype(m_ref.dtype)                # bf16 intermediate by default


def _fuse_kernel(mean_ref, x_ref, m_ref, o_ref, *, c, cp):
    """Normalize + modulation when the (2*Cp)-channel maps were precomputed."""
    x = x_ref[0]                                       # (C, T)
    maps = m_ref[0].astype(jnp.float32)                # (2*Cp, T), streamed as bf16
    o_ref[0] = (maps[:c] * (x - mean_ref[...]) + maps[cp:cp + c]).astype(o_ref.dtype)


# ------------------------------ tiling helpers ------------------------------ #

def _round_up(v, m):
    return ((v + m - 1) // m) * m


def _device_vmem_bytes():
    try:
        return int(pltpu.get_tpu_info().vmem_capacity_bytes)   # 64 MiB v7x, 128 MiB v5e/v6e
    except Exception:
        return 64 << 20                                        # conservative (v7x)


def _pick_tile(hw_pad, per_lane_bytes, *, fixed_bytes=0, frac=0.70, max_tile=8192):
    """Largest multiple-of-128 tile dividing hw_pad whose footprint
    (per_lane_bytes * tile + fixed_bytes) stays within ~frac of device VMEM."""
    budget = max(int(frac * _device_vmem_bytes()) - int(fixed_bytes), 0)
    target = min(max(budget // max(int(per_lane_bytes), 1), 128), max_tile)
    target = max(128, (target // 128) * 128)
    best, t = 128, 128
    while t <= min(hw_pad, target):
        if hw_pad % t == 0:
            best = t
        t += 128
    return best


def _vmem_limit(need_bytes):
    vmem = _device_vmem_bytes()
    # headroom for compiler temporaries; stay above the 16/32 MiB scoped
    # defaults and below ~90% of physical VMEM (64 MiB on v7x).
    return int(min(max(int(need_bytes) + (4 << 20), 32 << 20), int(0.9 * vmem)))


def _stream_spec(block_shape, index_map, buffers=2):
    """BlockSpec with optional >2-deep pipelining (set buffers=3 on the bbox
    stream if a profile shows exposed DMA in pass 2)."""
    if buffers > 2:
        try:
            return pl.BlockSpec(block_shape, index_map,
                                pipeline_mode=pl.Buffered(buffers))
        except Exception:      # older jax without pipeline_mode / Buffered
            pass
    return pl.BlockSpec(block_shape, index_map)


# ------------------------------- wrapper ----------------------------------- #

def spade_norm2d(x, vector, bbox, params, eps=1e-5, hw_tile=None,
                 matmul_dtype=jnp.bfloat16, bbox_buffers=2):
    """Pallas implementation of SPADENorm2d.forward(x, vector, bbox).

    x:      (B, C, H, W)        float32 NCHW
    vector: (B*O, num_w)        unused by the reference forward (parity only)
    bbox:   (B, num_w, Hb, Wb)  float32 NCHW

    matmul_dtype: default bf16 on every generation (v5e/v6e/v7x MXUs are
                  bf16-native; accumulation is f32).  The bbox stream and the
                  fused projection weights are cast host-side so the kernels
                  stream half the bytes.  Pass None for a pure-f32 path.
    """
    del vector  # unused by the reference forward pass
    b, c, h, w = x.shape
    _, num_w, bh, bw = bbox.shape
    hw = h * w
    hw_pad = _round_up(hw, 128)
    cp = _round_up(c, 8)
    xb = jnp.dtype(x.dtype).itemsize

    mm = matmul_dtype
    g_dtype = mm if mm is not None else jnp.float32
    gb = jnp.dtype(g_dtype).itemsize

    # Zero-pad the flattened spatial axis to a multiple of 128: keeps every
    # tile lane-dense / 128-aligned and keeps batch statistics exact (zeros add
    # nothing to sum / sum-sq; we divide by the true count).
    # TODO(synk): for very large images, handle the tail with a masked final
    # tile instead of an HBM pad copy.
    xf = x.reshape(b, c, hw)
    if hw_pad != hw:
        xf = jnp.pad(xf, ((0, 0), (0, 0), (0, hw_pad - hw)))

    lane = 128

    def _ok(tile):
        return tile is not None and tile % 128 == 0 and hw_pad % tile == 0

    # ------------------ pass 1: per-channel batch statistics ---------------- #
    # Pass 1 streams only x (plus a tiny lane-wide accumulator), so it uses its
    # own, larger tile than pass 2.
    per_lane1 = 2 * c * xb + 4 * c * 4                  # dbl-buffered x + local s/q/chunk
    fixed1 = 2 * (2 * c * lane * 4)                     # partial-sum output block
    t1 = hw_tile if _ok(hw_tile) else _pick_tile(hw_pad, per_lane1,
                                                 fixed_bytes=fixed1, max_tile=16384)
    n_t1 = hw_pad // t1
    n_chunks = t1 // lane
    # single end-of-step flush for small C; flush more often for large C to cap
    # live vreg footprint of the local accumulators.
    flush_every = n_chunks if c <= 64 else (4 if c <= 128 else 1)
    flush_every = max(1, min(flush_every, n_chunks))

    part = pl.pallas_call(
        functools.partial(_stats_kernel, lane=lane, flush_every=flush_every),
        out_shape=jax.ShapeDtypeStruct((n_t1, 2, c, lane), jnp.float32),
        grid=(n_t1, b),
        in_specs=[pl.BlockSpec((1, c, t1), lambda ti, bi: (bi, 0, ti))],
        out_specs=pl.BlockSpec((1, 2, c, lane), lambda ti, bi: (ti, 0, 0, 0)),
        compiler_params=pltpu.CompilerParams(
            dimension_semantics=("parallel", "arbitrary"),
            vmem_limit_bytes=_vmem_limit(per_lane1 * t1 + fixed1)),
    )(xf)

    # Tiny final reduce + mean / rsqrt once, in plain JAX — not per tile.
    # TODO(synk): E[x^2]-E[x]^2 in f32 can cancel for very large B*H*W or large
    # means; switch to a shifted / Welford-style combine of the partials then.
    count = float(b * hw)
    mean_c = part[:, 0].sum(axis=(0, 2)) / count
    var_c = part[:, 1].sum(axis=(0, 2)) / count - mean_c * mean_c
    inv_c = jax.lax.rsqrt(var_c + eps)
    mean = mean_c.reshape(c, 1).astype(jnp.float32)

    # Fused projection parameters (rebuilt per call so the BN 1/std can be
    # folded in on the JAX side — removes a (C,T) VPU multiply per tile):
    #   rows [0 : c]      weight proj * inv_std   (the "+1" folded into bias)
    #   rows [cp: cp+c]   bias proj
    # Each half is padded to cp = round_up(c, 8) rows so the maps split in the
    # kernels is sublane-aligned.
    w_w = params['weight_proj_w'].astype(jnp.float32)
    w_b = params['bias_proj_w'].astype(jnp.float32)
    b_w = params['weight_proj_b'].astype(jnp.float32)
    b_b = params['bias_proj_b'].astype(jnp.float32)
    wcat = jnp.zeros((2 * cp, num_w), jnp.float32)
    wcat = wcat.at[:c].set(w_w * inv_c[:, None])
    wcat = wcat.at[cp:cp + c].set(w_b)
    bcat = jnp.zeros((2 * cp, 1), jnp.float32)
    bcat = bcat.at[:c, 0].set((b_w + 1.0) * inv_c)
    bcat = bcat.at[cp:cp + c, 0].set(b_b)
    if mm is not None:
        wcat = wcat.astype(mm)            # bf16 weights -> native MXU rate, f32 accum
    wb_ = jnp.dtype(wcat.dtype).itemsize
    fixed_params = 2 * cp * num_w * wb_ + 2 * cp * 4 + c * 4   # wcat + bcat + mean

    # ---------------- pass 2: normalize + projections + modulation ---------- #
    if (bh, bw) == (h, w):
        gf = bbox.reshape(b, num_w, hw)
        if hw_pad != hw:
            gf = jnp.pad(gf, ((0, 0), (0, 0), (0, hw_pad - hw)))
        if gf.dtype != g_dtype:
            # Host-side cast: halves the dominant bbox HBM stream and its VMEM
            # double-buffer (ideally the producer already emits bf16).
            gf = gf.astype(g_dtype)

        # VMEM footprint per lane column (includes the f32 matmul result temp).
        per_lane2 = (2 * c * xb                         # x tile (dbl-buffered)
                     + 2 * c * xb                       # out tile (dbl-buffered)
                     + bbox_buffers * num_w * gb        # bbox stream
                     + 2 * cp * 4                       # (2*Cp, t) f32 matmul result
                     + 2 * c * 4)                       # elementwise temporaries
        t = hw_tile if _ok(hw_tile) else _pick_tile(hw_pad, per_lane2,
                                                    fixed_bytes=fixed_params)
        n_t = hw_pad // t

        out_flat = pl.pallas_call(
            functools.partial(_apply_kernel, c=c, cp=cp),
            out_shape=jax.ShapeDtypeStruct((b, c, hw_pad), x.dtype),
            grid=(n_t, b),   # spatial axis first: v7x megacore shards the big axis
            in_specs=[
                pl.BlockSpec((c, 1), lambda ti, bi: (0, 0)),            # mean
                pl.BlockSpec((2 * cp, num_w), lambda ti, bi: (0, 0)),   # fused weights
                pl.BlockSpec((2 * cp, 1), lambda ti, bi: (0, 0)),       # fused biases
                pl.BlockSpec((1, c, t), lambda ti, bi: (bi, 0, ti)),    # x tile
                _stream_spec((1, num_w, t), lambda ti, bi: (bi, 0, ti),
                             buffers=bbox_buffers),                     # bbox tile
            ],
            out_specs=pl.BlockSpec((1, c, t), lambda ti, bi: (bi, 0, ti)),
            compiler_params=pltpu.CompilerParams(
                dimension_semantics=("parallel", "parallel"),
                vmem_limit_bytes=_vmem_limit(per_lane2 * t + fixed_params)),
        )(mean, wcat, bcat, xf, gf)
    else:
        # Project at bbox's native resolution (bf16 output), bilinearly resize
        # the (2*Cp)-channel modulation maps (exact by linearity), then fuse.
        bhw = bh * bw
        bhw_pad = _round_up(bhw, 128)
        gf = bbox.reshape(b, num_w, bhw)
        if bhw_pad != bhw:
            gf = jnp.pad(gf, ((0, 0), (0, 0), (0, bhw_pad - bhw)))
        if gf.dtype != g_dtype:
            gf = gf.astype(g_dtype)

        maps_dtype = jnp.bfloat16 if mm is not None else jnp.float32
        mb = jnp.dtype(maps_dtype).itemsize

        per_lane_p = (bbox_buffers * num_w * gb          # bbox stream
                      + 2 * (2 * cp) * mb                # maps out (dbl-buffered)
                      + 2 * cp * 4)                      # f32 matmul result temp
        tb = _pick_tile(bhw_pad, per_lane_p, fixed_bytes=fixed_params)
        proj = pl.pallas_call(
            _proj_kernel,
            out_shape=jax.ShapeDtypeStruct((b, 2 * cp, bhw_pad), maps_dtype),
            grid=(bhw_pad // tb, b),
            in_specs=[
                pl.BlockSpec((2 * cp, num_w), lambda ti, bi: (0, 0)),
                pl.BlockSpec((2 * cp, 1), lambda ti, bi: (0, 0)),
                _stream_spec((1, num_w, tb), lambda ti, bi: (bi, 0, ti),
                             buffers=bbox_buffers),
            ],
            out_specs=pl.BlockSpec((1, 2 * cp, tb), lambda ti, bi: (bi, 0, ti)),
            compiler_params=pltpu.CompilerParams(
                dimension_semantics=("parallel", "parallel"),
                vmem_limit_bytes=_vmem_limit(per_lane_p * tb + fixed_params)),
        )(wcat, bcat, gf)

        # bf16 intermediate halves the full-res maps round-trip.
        # TODO(synk): fold this upsample into _fuse_kernel (fetch the low-res
        # map window per output tile + precomputed lane weights) to cut the
        # full-res maps HBM round-trip entirely.
        # TODO(synk): jax.image.resize 'bilinear' matches PyTorch
        # align_corners=False for upsampling; antialias differs on downsampling.
        maps = jax.image.resize(proj[:, :, :bhw].reshape(b, 2 * cp, bh, bw),
                                (b, 2 * cp, h, w), method='bilinear')
        mf = maps.reshape(b, 2 * cp, hw)
        if hw_pad != hw:
            mf = jnp.pad(mf, ((0, 0), (0, 0), (0, hw_pad - hw)))

        per_lane_f = (2 * c * xb + 2 * c * xb            # x in + out (dbl-buffered)
                      + 2 * (2 * cp) * mb                # maps stream
                      + 2 * c * 4)                       # elementwise temporaries
        t = hw_tile if _ok(hw_tile) else _pick_tile(hw_pad, per_lane_f,
                                                    fixed_bytes=c * 4)
        out_flat = pl.pallas_call(
            functools.partial(_fuse_kernel, c=c, cp=cp),
            out_shape=jax.ShapeDtypeStruct((b, c, hw_pad), x.dtype),
            grid=(hw_pad // t, b),
            in_specs=[
                pl.BlockSpec((c, 1), lambda ti, bi: (0, 0)),              # mean
                pl.BlockSpec((1, c, t), lambda ti, bi: (bi, 0, ti)),      # x tile
                pl.BlockSpec((1, 2 * cp, t), lambda ti, bi: (bi, 0, ti)),  # maps
            ],
            out_specs=pl.BlockSpec((1, c, t), lambda ti, bi: (bi, 0, ti)),
            compiler_params=pltpu.CompilerParams(
                dimension_semantics=("parallel", "parallel"),
                vmem_limit_bytes=_vmem_limit(per_lane_f * t + c * 4)),
        )(mean, xf, mf)

    # TODO(synk): vis=True (returning the weight/bias maps) is not implemented
    # in the fused path; it would require emitting `maps` as a second output.
    if hw_pad != hw:
        out_flat = out_flat[:, :, :hw]
    return out_flat.reshape(b, c, h, w)


# ------------------------- parameter setup (glue) --------------------------- #

def _spectral_normalize(w2d, eps=1e-4):
    # TODO(synk): PyTorch spectral_norm uses 1-step power iteration with a
    # persistent random u; here we use the exact largest singular value (its
    # fixed point), so early-training values will not match bit-for-bit.
    sigma = jnp.linalg.norm(w2d, ord=2)
    return w2d / (sigma + 0.0)


def make_params(key, num_features, num_w):
    k1, k2, k3, k4 = jax.random.split(key, 4)
    bound = 1.0 / jnp.sqrt(num_w)  # PyTorch conv default init (fan_in = num_w)
    wp = jax.random.uniform(k1, (num_features, num_w), jnp.float32, -bound, bound)
    wb = jax.random.uniform(k2, (num_features, num_w), jnp.float32, -bound, bound)
    bp = jax.random.uniform(k3, (num_features,), jnp.float32, -bound, bound)
    bb = jax.random.uniform(k4, (num_features,), jnp.float32, -bound, bound)
    return {
        'weight_proj_w': _spectral_normalize(wp),
        'weight_proj_b': bp,
        'bias_proj_w': _spectral_normalize(wb),
        'bias_proj_b': bb,
    }


def reference(x, bbox, params, eps=1e-5):
    b, c, h, w = x.shape
    if bbox.shape[2:] != (h, w):
        bbox = jax.image.resize(bbox, bbox.shape[:2] + (h, w), method='bilinear')
    mean = x.mean(axis=(0, 2, 3), keepdims=True)
    var = x.var(axis=(0, 2, 3), keepdims=True)  # biased, training-mode BN
    xn = (x - mean) / jnp.sqrt(var + eps)
    wmap = jnp.einsum('ck,bkhw->bchw', params['weight_proj_w'], bbox) \
        + params['weight_proj_b'][None, :, None, None] + 1.0
    bmap = jnp.einsum('ck,bkhw->bchw', params['bias_proj_w'], bbox) \
        + params['bias_proj_b'][None, :, None, None]
    return wmap * xn + bmap


if __name__ == "__main__":
    key = jax.random.PRNGKey(0)
    B, C, H, W = 2, 4, 16, 16   # num_features = 4
    NUM_W = 8                   # stand-in for num_w=512 at small scale

    kx, kb, kb2, kv, kp, kx2, kb3 = jax.random.split(key, 7)
    x = jax.random.normal(kx, (B, C, H, W), jnp.float32)
    bbox = jax.random.normal(kb, (B, NUM_W, H, W), jnp.float32)
    bbox_lo = jax.random.normal(kb2, (B, NUM_W, H // 2, W // 2), jnp.float32)
    vector = jax.random.normal(kv, (B * 2, NUM_W), jnp.float32)  # unused by forward
    params = make_params(kp, C, NUM_W)

    # A: bbox at x resolution, f32 matmul path, 128-lane tiles forced so the
    #    spatially-tiled multi-step grid is exercised.  Tight tolerance checks
    #    the inv_std folding / padded-channel restructure exactly.
    out_a = spade_norm2d(x, vector, bbox, params, eps=1e-5, hw_tile=128,
                         matmul_dtype=None)
    out_a = jax.block_until_ready(out_a)
    ref_a = reference(x, bbox, params, eps=1e-5)
    assert out_a.shape == (B, C, H, W)
    assert jnp.allclose(out_a, ref_a, atol=1e-4, rtol=1e-4), \
        "mismatch vs reference (same-resolution, f32 path)"

    # B: same-resolution bbox, default bf16 streaming / MXU path (f32 accum).
    out_b = jax.block_until_ready(spade_norm2d(x, vector, bbox, params, eps=1e-5))
    assert jnp.allclose(out_b, ref_a, atol=5e-2, rtol=5e-2), \
        "mismatch vs reference (same-resolution, bf16 path)"

    # C: low-res bbox — project at native resolution (bf16 maps), bilinearly
    #    resize the (2*Cp)-channel modulation maps, then fuse.
    out_c = jax.block_until_ready(spade_norm2d(x, vector, bbox_lo, params, eps=1e-5))
    ref_c = reference(x, bbox_lo, params, eps=1e-5)
    assert jnp.allclose(out_c, ref_c, atol=5e-2, rtol=5e-2), \
        "mismatch vs reference (project-then-resize path)"

    # D: H*W = 100 (no multiple-of-128 divisor) — exercises the zero-padded
    #    lane tail instead of a full-extent fallback; f32 path, tight tolerance.
    x2 = jax.random.normal(kx2, (B, C, 10, 10), jnp.float32)
    bbox2 = jax.random.normal(kb3, (B, NUM_W, 10, 10), jnp.float32)
    out_d = jax.block_until_ready(
        spade_norm2d(x2, vector, bbox2, params, eps=1e-5, matmul_dtype=None))
    ref_d = reference(x2, bbox2, params, eps=1e-5)
    assert jnp.allclose(out_d, ref_d, atol=1e-4, rtol=1e-4), \
        "mismatch vs reference (lane-padded path)"

    print("KERNEL_OK")
</pallas_src>

<mosaic_0001>
module attributes {stable_mosaic.version = 11 : i64} {
  func.func @_stats_kernel(%arg0: i32, %arg1: i32, %arg2: memref<1x4x128xf32, #tpu.memory_space<vmem>>, %arg3: memref<1x2x4x128xf32, #tpu.memory_space<vmem>>) attributes {dimension_semantics = [#tpu.dimension_semantics<parallel>, #tpu.dimension_semantics<arbitrary>], iteration_bounds = array<i64: 2, 2>, scalar_prefetch = 0 : i64, scratch_operands = 0 : i64, tpu.core_type = #tpu.core_type<tc>, window_params = [{transform_indices = @transform_0, window_bounds = array<i64: 1, 4, 128>}, {transform_indices = @transform_1, window_bounds = array<i64: 1, 2, 4, 128>}]} {
    %c0_i32 = arith.constant 0 : i32
    %0 = arith.cmpi eq, %arg1, %c0_i32 : i32
    %1 = arith.extui %0 : i1 to i32
    %c0_i32_0 = arith.constant 0 : i32
    %2 = arith.cmpi ne, %1, %c0_i32_0 : i32
    scf.if %2 {
      %cst_19 = arith.constant 0.000000e+00 : f32
      %22 = vector.broadcast %cst_19 : f32 to vector<1x2x4x128xf32>
      %c0_20 = arith.constant 0 : index
      %c0_21 = arith.constant 0 : index
      %c0_22 = arith.constant 0 : index
      %c0_23 = arith.constant 0 : index
      %23 = vector.load %arg3[%c0_20, %c0_21, %c0_22, %c0_23] : memref<1x2x4x128xf32, #tpu.memory_space<vmem>>, vector<1x2x4x128xf32>
      tpu.vector_store %arg3[%c0_20, %c0_21, %c0_22, %c0_23], %22 {strides = array<i32>} : memref<1x2x4x128xf32, #tpu.memory_space<vmem>>, vector<1x2x4x128xf32>,
    } else {
    }
    %cst = arith.constant 0.000000e+00 : f32
    %3 = vector.broadcast %cst : f32 to vector<4x128xf32>
    %cst_1 = arith.constant 0.000000e+00 : f32
    %4 = vector.broadcast %cst_1 : f32 to vector<4x128xf32>
    %c0 = arith.constant 0 : index
    %c0_2 = arith.constant 0 : index
    %c0_3 = arith.constant 0 : index
    %5 = vector.load %arg2[%c0, %c0_2, %c0_3] : memref<1x4x128xf32, #tpu.memory_space<vmem>>, vector<1x4x128xf32>
    %6 = vector.shape_cast %5 : vector<1x4x128xf32> to vector<4x128xf32>
    %7 = arith.addf %3, %6 : vector<4x128xf32>
    %8 = arith.mulf %6, %6 : vector<4x128xf32>
    %9 = arith.addf %4, %8 : vector<4x128xf32>
    %c0_4 = arith.constant 0 : index
    %c0_5 = arith.constant 0 : index
    %c0_6 = arith.constant 0 : index
    %c0_7 = arith.constant 0 : index
    %10 = vector.load %arg3[%c0_4, %c0_5, %c0_6, %c0_7] : memref<1x2x4x128xf32, #tpu.memory_space<vmem>>, vector<1x1x4x128xf32>
    %11 = vector.shape_cast %10 : vector<1x1x4x128xf32> to vector<4x128xf32>
    %12 = arith.addf %11, %7 : vector<4x128xf32>
    %c0_8 = arith.constant 0 : index
    %c0_9 = arith.constant 0 : index
    %c0_10 = arith.constant 0 : index
    %c0_11 = arith.constant 0 : index
    %13 = vector.load %arg3[%c0_8, %c0_9, %c0_10, %c0_11] : memref<1x2x4x128xf32, #tpu.memory_space<vmem>>, vector<1x1x4x128xf32>
    %14 = vector.shape_cast %13 : vector<1x1x4x128xf32> to vector<4x128xf32>
    %15 = vector.shape_cast %12 : vector<4x128xf32> to vector<1x1x4x128xf32>
    tpu.vector_store %arg3[%c0_8, %c0_9, %c0_10, %c0_11], %15 {strides = array<i32>} : memref<1x2x4x128xf32, #tpu.memory_space<vmem>>, vector<1x1x4x128xf32>,
    %c0_12 = arith.constant 0 : index
    %c1 = arith.constant 1 : index
    %c0_13 = arith.constant 0 : index
    %c0_14 = arith.constant 0 : index
    %16 = vector.load %arg3[%c0_12, %c1, %c0_13, %c0_14] : memref<1x2x4x128xf32, #tpu.memory_space<vmem>>, vector<1x1x4x128xf32>
    %17 = vector.shape_cast %16 : vector<1x1x4x128xf32> to vector<4x128xf32>
    %18 = arith.addf %17, %9 : vector<4x128xf32>
    %c0_15 = arith.constant 0 : index
    %c1_16 = arith.constant 1 : index
    %c0_17 = arith.constant 0 : index
    %c0_18 = arith.constant 0 : index
    %19 = vector.load %arg3[%c0_15, %c1_16, %c0_17, %c0_18] : memref<1x2x4x128xf32, #tpu.memory_space<vmem>>, vector<1x1x4x128xf32>
    %20 = vector.shape_cast %19 : vector<1x1x4x128xf32> to vector<4x128xf32>
    %21 = vector.shape_cast %18 : vector<4x128xf32> to vector<1x1x4x128xf32>
    tpu.vector_store %arg3[%c0_15, %c1_16, %c0_17, %c0_18], %21 {strides = array<i32>} : memref<1x2x4x128xf32, #tpu.memory_space<vmem>>, vector<1x1x4x128xf32>,
    return
  }
  func.func @transform_0(%arg0: i32, %arg1: i32) -> (i32, i32, i32) {
    %c0_i32 = arith.constant 0 : i32
    %c0_i32_0 = arith.constant 0 : i32
    return %arg1, %c0_i32, %arg0 : i32, i32, i32
  }
  func.func @transform_1(%arg0: i32, %arg1: i32) -> (i32, i32, i32, i32) {
    %c0_i32 = arith.constant 0 : i32
    %c0_i32_0 = arith.constant 0 : i32
    %c0_i32_1 = arith.constant 0 : i32
    %c0_i32_2 = arith.constant 0 : i32
    return %arg0, %c0_i32, %c0_i32_0, %c0_i32_1 : i32, i32, i32, i32
  }
}

</mosaic_0001>

<llo_original>
// kernel: tpu_custom_call.1
$region0: #{tpu_custom_call.1}
  #allocation0 [shape = 'u32[]', space=smem, size = 0x4, offset = 0x4, fixed_abs, tag = 'smem constant byte address 0x4 - core index']
  #allocation1 [shape = 'u32[144,128]{1,0:T(1,128)}', space=vmem, size = 0x12000, scoped, tag = 'internal scratch']
  %s0 = inlined_call_operand.hbm [shape: f32[2,4,256], index: 0, kind: input, shape index: {}]
  %s1 = inlined_call_operand.hbm [shape: f32[2,2,4,128], index: 1, kind: output, shape index: {}]
  %s2 = sld [smem:[#allocation0]]
  $region45: #{tpu_custom_call.1} parent=0
    _
  %s4 = ssub.s32 1, %s2
  %s5 = scalar_select 0, %s4, %s2
  $region1: #{tpu_custom_call.1} parent=0
    #allocation2 [shape = 'u8[4096]{0}', space=vmem, size = 0x1000, scoped, tag = 'input window, operand 0']
    #allocation3 [shape = 's32[2]{0}', space=sflag, size = 0x8, scoped, tag = 'scoped memory for tpu_custom_call.1']
    #allocation4 [shape = 's32[2]{0}', space=sflag, size = 0x8, scoped, tag = 'scoped memory for tpu_custom_call.1']
    #allocation5 [shape = 'u8[8192]{0}', space=vmem, size = 0x2000, scoped, tag = 'output window, operand 0']
    %6 = vsyncpa [#allocation3], 0
    %s7 = scalar_lea.sflag [#allocation3], 1
    %8 = vsyncpa %s7, 0
    %9 = vsyncpa [#allocation4], 0
    %s10 = scalar_lea.sflag [#allocation4], 1
    %11 = vsyncpa %s10, 0
    loop: start=0, step=1, limit=6
    $region2: #{tpu_custom_call.1} parent=1 // loop_pre_header
      _
    $region3: #{tpu_custom_call.1} parent=1 // loop_header
      %s13 = sphi 0, %s17
      %p14 = scmp.ge.s32.totalorder %s13, 6
      %s20 = sphi 0, %s32
      %s21 = sphi 0, %s28
      %s22 = sphi 0, %s20
      %s23 = sphi 0, %s21
      %s24 = sphi 0, %s22
      %s25 = sphi 0, %s23
      %s37 = sphi 0, %s39
      %s40 = sphi 0, %s37
      %s41 = sphi 0, %s40
      %s57 = sphi 0, %s41
      %s63 = sphi 0, %s65
      %s66 = sphi 0, %s63
      %s67 = sphi 0, %s66
      %s83 = sphi 0, %s67
    $region4: #{tpu_custom_call.1} parent=1 // loop_header_branch
      %16 = sbr.rel (%p14) target = $region8
    $region5: #{tpu_custom_call.1} parent=1 // loop_body
      %s18 = ssub.s32 %s13, 1
      %s19 = ssub.s32 %s13, 2
      %s26 = sadd.s32 1, %s21
      %p27 = scmp.ge.s32.totalorder %s26, 2
      %s28 = scalar_select %p27, 0, %s26
      %s29 = sadd.s32 1, %s20
      %s30 = scalar_select %p27, %s29, %s20
      %p31 = scmp.ge.s32.totalorder %s30, 2
      %s32 = scalar_select %p31, 0, %s30
      %s33 = ssub.s32 %s21, %s28
      %s34 = ssub.s32 %s20, %s32
      %s35 = sor.u32 %s33, %s34
      %p36 = scmp.eq.s32.totalorder %s35, 0
      %s38 = sadd.s32 %s37, 1
      %s39 = scalar_select %p36, %s37, %s38
      %p42 = pneg %p36
      %p43 = scmp.eq.s32.totalorder %s13, 3
      %p44 = por %p42, %p43
      %p45 = scmp.ne.s32.totalorder %s37, %s40
      %p46 = scmp.eq.s32.totalorder %s13, 0
      %p47 = por %p45, %p46
      %p48 = scmp.ne.s32.totalorder %s37, %s40
      %p49 = scmp.eq.s32.totalorder %s18, 3
      %p50 = por %p48, %p49
      %p51 = scmp.ne.s32.totalorder %s40, %s41
      %p52 = scmp.eq.s32.totalorder %s18, 0
      %p53 = por %p51, %p52
      %p54 = scmp.ne.s32.totalorder %s40, %s41
      %p55 = scmp.eq.s32.totalorder %s19, 3
      %p56 = por %p54, %p55
      %p58 = scmp.ne.s32.totalorder %s41, %s57
      %p59 = scmp.eq.s32.totalorder %s19, 0
      %p60 = por %p58, %p59
      %s61 = ssub.s32 %s20, %s32
      %p62 = scmp.eq.s32.totalorder %s61, 0
      %s64 = sadd.s32 %s63, 1
      %s65 = scalar_select %p62, %s63, %s64
      %p68 = pneg %p62
      %p69 = scmp.eq.s32.totalorder %s13, 3
      %p70 = por %p68, %p69
      %p71 = scmp.ne.s32.totalorder %s63, %s66
      %p72 = scmp.eq.s32.totalorder %s13, 0
      %p73 = por %p71, %p72
      %p74 = scmp.ne.s32.totalorder %s63, %s66
      %p75 = scmp.eq.s32.totalorder %s18, 3
      %p76 = por %p74, %p75
      %p77 = scmp.ne.s32.totalorder %s66, %s67
      %p78 = scmp.eq.s32.totalorder %s18, 0
      %p79 = por %p77, %p78
      %p80 = scmp.ne.s32.totalorder %s66, %s67
      %p81 = scmp.eq.s32.totalorder %s19, 3
      %p82 = por %p80, %p81
      %p84 = scmp.ne.s32.totalorder %s67, %s83
      %p85 = scmp.eq.s32.totalorder %s19, 0
      %p86 = por %p84, %p85
      %p87 = scmp.le.s32.totalorder 1, %s13
      %p88 = scmp.lt.s32.totalorder %s13, 5
      %p89 = pnand %p87, %p88
      %p90 = pneg %p89
      // Predicated region
      $region9: #{tpu_custom_call.1} parent=5 // pred_check
        _
      $region10: #{tpu_custom_call.1} parent=5 // pred_check_branch
        %92 = sbr.rel (%p89) target = $region12
      $region11: #{tpu_custom_call.1} parent=5 // pred_region
        %s93 = ssub.s32 %s13, 1
      $region12: #{tpu_custom_call.1} parent=5 // pred_fallthru
        _
      %p94 = scmp.lt.s32.totalorder %s13, 4
      // Predicated region
      $region13: #{tpu_custom_call.1} parent=5 // pred_check
        %p95 = pneg %p94
      $region14: #{tpu_custom_call.1} parent=5 // pred_check_branch
        %97 = sbr.rel (%p95) target = $region16
      $region15: #{tpu_custom_call.1} parent=5 // pred_region
        // Predicated region
        $region17: #{tpu_custom_call.1} parent=15 // pred_check
          %p98 = pneg %p47
        $region18: #{tpu_custom_call.1} parent=15 // pred_check_branch
          %100 = sbr.rel (%p98) target = $region20
        $region19: #{tpu_custom_call.1} parent=15 // pred_region
          %s101 = sand.u32 %s37, 1
          %s102 = scalar_lea.sflag [#allocation3], %s101
          %s103 = sand.u32 %s37, 1
          %s104 = smul.addr %s103, 4
          %s105 = scalar_lea.vmem [#allocation2], %s104
          %s107 = ssub.s32 64, 64
          %108 = vsyncadd %s102, %s107
          %s109 = smul.addr %s21, 2
          %s110 = sadd.s32 %s20, %s109
          %s111 = smul.addr %s110, 64
          %s112 = scalar_lea.hbm %s0, %s111
          %s114 = sshll.u32 %s105, 4
          %s115 = int_to_ptr.vmem [resolvable:$true] %s114
          %117 = dma.hbm_to_vmem [thread:$0]  %s112, 64, %s115, %s102
        $region20: #{tpu_custom_call.1} parent=15 // pred_fallthru
          _
      $region16: #{tpu_custom_call.1} parent=5 // pred_fallthru
        _
      %p118 = scmp.le.s32.totalorder 1, %s13
      %p119 = scmp.lt.s32.totalorder %s13, 5
      %p120 = pnand %p118, %p119
      %p121 = pneg %p120
      // Predicated region
      $region21: #{tpu_custom_call.1} parent=5 // pred_check
        _
      $region22: #{tpu_custom_call.1} parent=5 // pred_check_branch
        %123 = sbr.rel (%p120) target = $region24
      $region23: #{tpu_custom_call.1} parent=5 // pred_region
        %s124 = ssub.s32 %s13, 1
        %s125 = sand.u32 %s40, 1
        %s126 = scalar_lea.sflag [#allocation3], %s125
        %s127 = sand.u32 %s40, 1
        %s128 = smul.addr %s127, 4
        %s129 = scalar_lea.vmem [#allocation2], %s128
        // Predicated region
        $region25: #{tpu_custom_call.1} parent=23 // pred_check
          %p130 = pneg %p53
        $region26: #{tpu_custom_call.1} parent=23 // pred_check_branch
          %132 = sbr.rel (%p130) target = $region28
        $region27: #{tpu_custom_call.1} parent=23 // pred_region
          %133 = dma.done %s126, 64
        $region28: #{tpu_custom_call.1} parent=23 // pred_fallthru
          _
        %s134 = sand.u32 %s40, 1
        %s135 = scalar_lea.sflag [#allocation3], %s134
        %s136 = sand.u32 %s40, 1
        %s137 = smul.addr %s136, 4
        %s138 = scalar_lea.vmem [#allocation2], %s137
        %p139 = pneg %p53
        %p140 = pneg %p50
        %p141 = pneg %p79
        %p142 = pneg %p76
        %s143 = sand.u32 %s66, 1
        %s144 = scalar_lea.sflag [#allocation4], %s143
        %s145 = sand.u32 %s66, 1
        %s146 = smul.addr %s145, 8
        %s147 = scalar_lea.vmem [#allocation5], %s146
        %p148 = scmp.eq.s32.totalorder %s23, 0
        // Predicated region
        $region29: #{tpu_custom_call.1} parent=23 // pred_check
          %p149 = pneg %p148
        $region30: #{tpu_custom_call.1} parent=23 // pred_check_branch
          %151 = sbr.rel (%p149) target = $region32
        $region31: #{tpu_custom_call.1} parent=23 // pred_region
          %152 = vst [vmem:[%s147] sm:$0xf] 0.0
          %153 = vst [vmem:[%s147 + $0x4] sm:$0xf] 0.0
        $region32: #{tpu_custom_call.1} parent=23 // pred_fallthru
          _
        %v154 = vld [vmem:[%s129] sm:$0xf]
        %v155 = vadd.f32 %v154, 0.0
        %v156 = vmul.f32 %v154, %v154
        %v157 = vadd.f32 %v156, 0.0
        %v158 = vld [vmem:[%s147] sm:$0xf]
        %v159 = vadd.f32 %v158, %v155
        %160 = vst [vmem:[%s147] sm:$0xf] %v159
        %s161 = scalar_lea.vmem %s147, 4 [#allocation5]
        %v162 = vld [vmem:[%s161] sm:$0xf]
        %v163 = vadd.f32 %v162, %v157
        %164 = vst [vmem:[%s161] sm:$0xf] %v163
        %s165 = sand.u32 %s66, 1
        %s166 = scalar_lea.sflag [#allocation4], %s165
        %s167 = sand.u32 %s66, 1
        %s168 = smul.addr %s167, 8
        %s169 = scalar_lea.vmem [#allocation5], %s168
        // Predicated region
        $region33: #{tpu_custom_call.1} parent=23 // pred_check
          %p170 = pneg %p76
        $region34: #{tpu_custom_call.1} parent=23 // pred_check_branch
          %172 = sbr.rel (%p170) target = $region36
        $region35: #{tpu_custom_call.1} parent=23 // pred_region
          %s174 = ssub.s32 128, 128
          %175 = vsyncadd %s166, %s174
          %s176 = smul.addr %s22, 2
          %s177 = smul.addr %s176, 64
          %s178 = scalar_lea.hbm %s1, %s177
          %s179 = sshll.u32 %s169, 4
          %s180 = int_to_ptr.vmem [resolvable:$true] %s179
          %185 = dma.vmem_to_hbm [thread:$0]  %s180, 128, %s178, %s166, 64, 64, 4
        $region36: #{tpu_custom_call.1} parent=23 // pred_fallthru
          _
      $region24: #{tpu_custom_call.1} parent=5 // pred_fallthru
        _
      %p186 = scmp.le.s32.totalorder 2, %s13
      // Predicated region
      $region37: #{tpu_custom_call.1} parent=5 // pred_check
        %p187 = pneg %p186
      $region38: #{tpu_custom_call.1} parent=5 // pred_check_branch
        %189 = sbr.rel (%p187) target = $region40
      $region39: #{tpu_custom_call.1} parent=5 // pred_region
        %s190 = ssub.s32 %s13, 2
        // Predicated region
        $region41: #{tpu_custom_call.1} parent=39 // pred_check
          %p191 = pneg %p82
        $region42: #{tpu_custom_call.1} parent=39 // pred_check_branch
          %193 = sbr.rel (%p191) target = $region44
        $region43: #{tpu_custom_call.1} parent=39 // pred_region
          %s194 = sand.u32 %s67, 1
          %s195 = scalar_lea.sflag [#allocation4], %s194
          %s196 = sand.u32 %s67, 1
          %s197 = smul.addr %s196, 8
          %s198 = scalar_lea.vmem [#allocation5], %s197
          %199 = dma.done %s195, 128
        $region44: #{tpu_custom_call.1} parent=39 // pred_fallthru
          _
      $region40: #{tpu_custom_call.1} parent=5 // pred_fallthru
        _
    $region6: #{tpu_custom_call.1} parent=1 // loop_footer
      %s17 = sadd.s32 1, %s13
    $region7: #{tpu_custom_call.1} parent=1 // loop_footer_branch
      %12 = sbr.rel target = $region3
    $region8: #{tpu_custom_call.1} parent=1 // loop_exit
      _
    %200 = vsyncpa [#allocation3], 1
    %s201 = scalar_lea.sflag [#allocation3], 1
    %202 = vsyncpa %s201, 1
    %203 = vsyncpa [#allocation4], 1
    %s204 = scalar_lea.sflag [#allocation4], 1
    %205 = vsyncpa %s204, 1

</llo_original>
